<compile_context>
chip_gen: v7x
topology: tpu7x:2x2x1
jax: 0.10.0
libtpu: 0.0.40
codegen_flags: <defaults>
</compile_context>

<pallas_src>
import functools

import jax
import jax.numpy as jnp
from jax.experimental import pallas as pl
from jax.experimental.pallas import tpu as pltpu


HIDDEN = 32            # hidden width of the stand-in noise predictor
MAX_HW_TILE = 32768    # lane-tile cap (safe for v7x's 64 MiB VMEM)
TARGET_STREAM_BYTES = 512 * 1024   # aim >= 512 KiB per input stream per step
MAX_BATCH_BLOCK = 16   # unroll cap for the per-image loop


def _choose_tiling(B, C, HW):
    """Pick (batch_block, hw_tile) so each step moves a large contiguous slab."""
    # Spatial tile: full extent if small, else the largest 128-multiple divisor
    # of HW that is <= MAX_HW_TILE.
    if HW <= MAX_HW_TILE:
        hw_tile = HW
    else:
        hw_tile = MAX_HW_TILE - (MAX_HW_TILE % 128)
        while hw_tile >= 128 and HW % hw_tile != 0:
            hw_tile -= 128
        if hw_tile < 128:
            hw_tile = HW            # fallback: one tile spans the whole image
    # Batch block: enough images per step to hit the per-stream byte target.
    per_image_bytes = C * hw_tile * 4
    want = max(1, TARGET_STREAM_BYTES // per_image_bytes)
    bblk = int(min(B, want, MAX_BATCH_BLOCK))
    while B % bblk != 0:
        bblk -= 1
    return bblk, hw_tile


def _diffusion_loss_kernel(ab_ref, x0_ref, eps_ref, bias_ref,
                           w1t_ref, w2t_ref, b2_ref, out_ref, *, bblk):
    b0 = pl.program_id(0) * bblk          # absolute batch offset of this block

    w1t = w1t_ref[...]                    # (HIDDEN, C)
    w2t = w2t_ref[...]                    # (C, HIDDEN)
    b2 = b2_ref[...]                      # (C, 1)

    hw_tile = x0_ref.shape[-1]
    acc = jnp.zeros((1, hw_tile), jnp.float32)   # lane-dense partial sum

    # Static unroll over the batch block (bblk is small and compile-time known).
    for i in range(bblk):
        x0 = x0_ref[i]                    # (C, hw_tile)  spatial on lanes
        eps = eps_ref[i]                  # (C, hw_tile)

        # Per-image scalars from the (2, B) SMEM table (long axis last).
        sab = ab_ref[0, b0 + i]           # sqrt(alphabar_t)
        somab = ab_ref[1, b0 + i]         # sqrt(1 - alphabar_t)

        # Forward noising: xt = sqrt(abar_t) * x0 + sqrt(1 - abar_t) * eps
        xt = sab * x0 + somab * eps

        # Stand-in noise predictor: two 1x1 convs, channels on sublanes.
        # bias_ref already holds b1 + t_embed[t] fused in the wrapper.
        h = jnp.dot(w1t, xt, preferred_element_type=jnp.float32)
        h = jnp.maximum(h + bias_ref[i], 0.0)                 # (HIDDEN, hw_tile)
        pred = jnp.dot(w2t, h, preferred_element_type=jnp.float32) + b2

        diff = eps - pred
        acc = acc + jnp.sum(diff * diff, axis=0, keepdims=True)   # sublane reduce

    # Lane-dense, unmasked store of the per-(batch-block, tile) partial sum.
    out_ref[0, 0] = acc


def diffusion_loss(x0_rows, eps_rows, ab, bias, w1t, w2t, b2):
    """x0_rows / eps_rows: (B, C, H*W); ab: (2, B); bias: (B, HIDDEN, 1)."""
    B, C, HW = x0_rows.shape
    bblk, hw_tile = _choose_tiling(B, C, HW)
    n_b = B // bblk
    n_hw = HW // hw_tile

    kernel = functools.partial(_diffusion_loss_kernel, bblk=bblk)

    partials = pl.pallas_call(
        kernel,
        out_shape=jax.ShapeDtypeStruct((n_b, n_hw, 1, hw_tile), jnp.float32),
        grid_spec=pltpu.PrefetchScalarGridSpec(
            num_scalar_prefetch=0,
            grid=(n_b, n_hw),
            in_specs=[
                # (2, B) sqrt(alphabar)/sqrt(1-alphabar) table, whole array in SMEM
                pl.BlockSpec(memory_space=pltpu.MemorySpace.SMEM),
                pl.BlockSpec((bblk, C, hw_tile), lambda b, j: (b, 0, j)),  # x0
                pl.BlockSpec((bblk, C, hw_tile), lambda b, j: (b, 0, j)),  # eps
                pl.BlockSpec((bblk, HIDDEN, 1), lambda b, j: (b, 0, 0)),   # b1+temb
                pl.BlockSpec(w1t.shape, lambda b, j: (0, 0)),              # W1^T
                pl.BlockSpec(w2t.shape, lambda b, j: (0, 0)),              # W2^T
                pl.BlockSpec(b2.shape, lambda b, j: (0, 0)),               # b2
            ],
            out_specs=pl.BlockSpec((1, 1, 1, hw_tile),
                                   lambda b, j: (b, j, 0, 0)),
        ),
        compiler_params=pltpu.CompilerParams(
            dimension_semantics=("parallel", "parallel"),
            vmem_limit_bytes=32 << 20),
    )(ab, x0_rows, eps_rows, bias, w1t, w2t, b2)

    # mean over all elements (matches nn.MSELoss default reduction='mean')
    return jnp.sum(partials) / jnp.float32(B * C * HW)


def diffusion_forward(x0_nchw, beta, params, key):
    """Replicates Diffusion.forward: random t, random eps, noising, MSE."""
    B, C, H, W = x0_nchw.shape
    T = beta.shape[0] - 1
    alpha = 1.0 - beta
    alphabar = jnp.cumprod(alpha)     # same indexing as torch.cumprod(alpha, 0)

    key_t, key_eps = jax.random.split(key)
    t = jax.random.randint(key_t, (B,), 1, T + 1)                # t in [1, T]
    eps = jax.random.normal(key_eps, x0_nchw.shape, jnp.float32)

    abar_t = alphabar[t]                                         # (B,)
    # (2, B): long axis last -> minimal SMEM padding.
    ab = jnp.stack([jnp.sqrt(abar_t), jnp.sqrt(1.0 - abar_t)],
                   axis=0).astype(jnp.float32)

    # NCHW -> (B, C, H*W): contiguous flatten, no transpose / extra HBM pass.
    x0_rows = x0_nchw.reshape(B, C, H * W)
    eps_rows = eps.reshape(B, C, H * W)

    # Fuse the conv bias with the per-timestep embedding: one bias per image.
    bias = (params["b1"][None, :, :] +
            params["t_embed"][t][:, :, None]).astype(jnp.float32)   # (B, HIDDEN, 1)

    loss = diffusion_loss(x0_rows, eps_rows, ab, bias,
                          params["w1t"], params["w2t"], params["b2"])
    return loss


def init_params(key, num_channels, T):
    """Deterministic synthetic parameters for the stand-in noise predictor."""
    k1, k2, k3 = jax.random.split(key, 3)
    return {
        # stored pre-transposed so the kernel's channel-on-sublane matmuls
        # need no in-kernel transpose
        "w1t": 0.1 * jax.random.normal(k1, (HIDDEN, num_channels), jnp.float32),
        "b1": jnp.zeros((HIDDEN, 1), jnp.float32),
        "w2t": 0.1 * jax.random.normal(k2, (num_channels, HIDDEN), jnp.float32),
        "b2": jnp.zeros((num_channels, 1), jnp.float32),
        "t_embed": 0.1 * jax.random.normal(k3, (T + 1, HIDDEN), jnp.float32),
    }


if __name__ == "__main__":
    B, C, H, W = 2, 4, 16, 16
    T = 10

    root = jax.random.PRNGKey(0)
    k_x0, k_params, k_fwd = jax.random.split(root, 3)

    x0 = jax.random.normal(k_x0, (B, C, H, W), jnp.float32)      # NCHW input
    beta = jnp.linspace(1e-4, 0.02, T + 1).astype(jnp.float32)   # len(beta) = T+1
    params = init_params(k_params, C, T)

    loss = diffusion_forward(x0, beta, params, k_fwd)
    loss = jax.block_until_ready(loss)

    assert loss.shape == () and jnp.isfinite(loss)
    print("KERNEL_OK")
</pallas_src>

<mosaic_0001>
module attributes {stable_mosaic.version = 11 : i64} {
  func.func @_diffusion_loss_kernel(%arg0: i32, %arg1: i32, %arg2: memref<2x2xf32, #tpu.memory_space<smem>>, %arg3: memref<2x4x256xf32, #tpu.memory_space<vmem>>, %arg4: memref<2x4x256xf32, #tpu.memory_space<vmem>>, %arg5: memref<2x32x1xf32, #tpu.memory_space<vmem>>, %arg6: memref<32x4xf32, #tpu.memory_space<vmem>>, %arg7: memref<4x32xf32, #tpu.memory_space<vmem>>, %arg8: memref<4x1xf32, #tpu.memory_space<vmem>>, %arg9: memref<1x1x1x256xf32, #tpu.memory_space<vmem>>) attributes {dimension_semantics = [#tpu.dimension_semantics<parallel>, #tpu.dimension_semantics<parallel>], iteration_bounds = array<i64: 1, 1>, scalar_prefetch = 0 : i64, scratch_operands = 0 : i64, tpu.core_type = #tpu.core_type<tc>, window_params = [{transform_indices = @transform_0, window_bounds = array<i64: 2, 2>}, {transform_indices = @transform_1, window_bounds = array<i64: 2, 4, 256>}, {transform_indices = @transform_2, window_bounds = array<i64: 2, 4, 256>}, {transform_indices = @transform_3, window_bounds = array<i64: 2, 32, 1>}, {pipeline_mode = #tpu.pipeline_mode<synchronous>, transform_indices = @transform_4, window_bounds = array<i64: 32, 4>}, {pipeline_mode = #tpu.pipeline_mode<synchronous>, transform_indices = @transform_5, window_bounds = array<i64: 4, 32>}, {pipeline_mode = #tpu.pipeline_mode<synchronous>, transform_indices = @transform_6, window_bounds = array<i64: 4, 1>}, {transform_indices = @transform_7, window_bounds = array<i64: 1, 1, 1, 256>}]} {
    %c2_i32 = arith.constant 2 : i32
    %0 = arith.muli %arg0, %c2_i32 : i32
    %c0 = arith.constant 0 : index
    %c0_0 = arith.constant 0 : index
    %1 = vector.load %arg6[%c0, %c0_0] : memref<32x4xf32, #tpu.memory_space<vmem>>, vector<32x4xf32>
    %c0_1 = arith.constant 0 : index
    %c0_2 = arith.constant 0 : index
    %2 = vector.load %arg7[%c0_1, %c0_2] : memref<4x32xf32, #tpu.memory_space<vmem>>, vector<4x32xf32>
    %c0_3 = arith.constant 0 : index
    %c0_4 = arith.constant 0 : index
    %3 = vector.load %arg8[%c0_3, %c0_4] : memref<4x1xf32, #tpu.memory_space<vmem>>, vector<4x1xf32>
    %cst = arith.constant 0.000000e+00 : f32
    %4 = vector.broadcast %cst : f32 to vector<1x256xf32>
    %c0_5 = arith.constant 0 : index
    %c0_6 = arith.constant 0 : index
    %c0_7 = arith.constant 0 : index
    %5 = vector.load %arg3[%c0_5, %c0_6, %c0_7] : memref<2x4x256xf32, #tpu.memory_space<vmem>>, vector<1x4x256xf32>
    %6 = vector.shape_cast %5 : vector<1x4x256xf32> to vector<4x256xf32>
    %c0_8 = arith.constant 0 : index
    %c0_9 = arith.constant 0 : index
    %c0_10 = arith.constant 0 : index
    %7 = vector.load %arg4[%c0_8, %c0_9, %c0_10] : memref<2x4x256xf32, #tpu.memory_space<vmem>>, vector<1x4x256xf32>
    %8 = vector.shape_cast %7 : vector<1x4x256xf32> to vector<4x256xf32>
    %c0_i32 = arith.constant 0 : i32
    %9 = arith.addi %0, %c0_i32 : i32
    %c0_11 = arith.constant 0 : index
    %10 = arith.index_cast %9 : i32 to index
    %11 = memref.load %arg2[%c0_11, %10] : memref<2x2xf32, #tpu.memory_space<smem>>
    %c0_i32_12 = arith.constant 0 : i32
    %12 = arith.addi %0, %c0_i32_12 : i32
    %c1 = arith.constant 1 : index
    %13 = arith.index_cast %12 : i32 to index
    %14 = memref.load %arg2[%c1, %13] : memref<2x2xf32, #tpu.memory_space<smem>>
    %15 = vector.broadcast %11 : f32 to vector<4x256xf32>
    %16 = arith.mulf %15, %6 : vector<4x256xf32>
    %17 = vector.broadcast %14 : f32 to vector<4x256xf32>
    %18 = arith.mulf %17, %8 : vector<4x256xf32>
    %19 = arith.addf %16, %18 : vector<4x256xf32>
    %cst_13 = arith.constant dense<0.000000e+00> : vector<32x256xf32>
    %20 = tpu.matmul %1, %19, %cst_13 {dimension_numbers = #tpu.dot_dimension_numbers<[1], [0], [0], [1], [0, 0, 1, 1], [], []>} : vector<32x4xf32>, vector<4x256xf32>, vector<32x256xf32> -> vector<32x256xf32>
    %c0_14 = arith.constant 0 : index
    %c0_15 = arith.constant 0 : index
    %c0_16 = arith.constant 0 : index
    %21 = vector.load %arg5[%c0_14, %c0_15, %c0_16] : memref<2x32x1xf32, #tpu.memory_space<vmem>>, vector<1x32x1xf32>
    %22 = vector.shape_cast %21 : vector<1x32x1xf32> to vector<32x1xf32>
    %23 = vector.broadcast %22 : vector<32x1xf32> to vector<32x256xf32>
    %24 = arith.addf %20, %23 : vector<32x256xf32>
    %cst_17 = arith.constant 0.000000e+00 : f32
    %25 = vector.broadcast %cst_17 : f32 to vector<32x256xf32>
    %26 = arith.maximumf %24, %25 : vector<32x256xf32>
    %cst_18 = arith.constant dense<0.000000e+00> : vector<4x256xf32>
    %27 = tpu.matmul %2, %26, %cst_18 {dimension_numbers = #tpu.dot_dimension_numbers<[1], [0], [0], [1], [0, 0, 1, 1], [], []>} : vector<4x32xf32>, vector<32x256xf32>, vector<4x256xf32> -> vector<4x256xf32>
    %28 = vector.broadcast %3 : vector<4x1xf32> to vector<4x256xf32>
    %29 = arith.addf %27, %28 : vector<4x256xf32>
    %30 = arith.subf %8, %29 : vector<4x256xf32>
    %31 = arith.mulf %30, %30 : vector<4x256xf32>
    %cst_19 = arith.constant dense<0.000000e+00> : vector<256xf32>
    %32 = vector.multi_reduction <add>, %31, %cst_19 [0] : vector<4x256xf32> to vector<256xf32>
    %33 = vector.shape_cast %32 : vector<256xf32> to vector<1x256xf32>
    %34 = arith.addf %4, %33 : vector<1x256xf32>
    %c1_20 = arith.constant 1 : index
    %c0_21 = arith.constant 0 : index
    %c0_22 = arith.constant 0 : index
    %35 = vector.load %arg3[%c1_20, %c0_21, %c0_22] : memref<2x4x256xf32, #tpu.memory_space<vmem>>, vector<1x4x256xf32>
    %36 = vector.shape_cast %35 : vector<1x4x256xf32> to vector<4x256xf32>
    %c1_23 = arith.constant 1 : index
    %c0_24 = arith.constant 0 : index
    %c0_25 = arith.constant 0 : index
    %37 = vector.load %arg4[%c1_23, %c0_24, %c0_25] : memref<2x4x256xf32, #tpu.memory_space<vmem>>, vector<1x4x256xf32>
    %38 = vector.shape_cast %37 : vector<1x4x256xf32> to vector<4x256xf32>
    %c1_i32 = arith.constant 1 : i32
    %39 = arith.addi %0, %c1_i32 : i32
    %c0_26 = arith.constant 0 : index
    %40 = arith.index_cast %39 : i32 to index
    %41 = memref.load %arg2[%c0_26, %40] : memref<2x2xf32, #tpu.memory_space<smem>>
    %c1_i32_27 = arith.constant 1 : i32
    %42 = arith.addi %0, %c1_i32_27 : i32
    %c1_28 = arith.constant 1 : index
    %43 = arith.index_cast %42 : i32 to index
    %44 = memref.load %arg2[%c1_28, %43] : memref<2x2xf32, #tpu.memory_space<smem>>
    %45 = vector.broadcast %41 : f32 to vector<4x256xf32>
    %46 = arith.mulf %45, %36 : vector<4x256xf32>
    %47 = vector.broadcast %44 : f32 to vector<4x256xf32>
    %48 = arith.mulf %47, %38 : vector<4x256xf32>
    %49 = arith.addf %46, %48 : vector<4x256xf32>
    %cst_29 = arith.constant dense<0.000000e+00> : vector<32x256xf32>
    %50 = tpu.matmul %1, %49, %cst_29 {dimension_numbers = #tpu.dot_dimension_numbers<[1], [0], [0], [1], [0, 0, 1, 1], [], []>} : vector<32x4xf32>, vector<4x256xf32>, vector<32x256xf32> -> vector<32x256xf32>
    %c1_30 = arith.constant 1 : index
    %c0_31 = arith.constant 0 : index
    %c0_32 = arith.constant 0 : index
    %51 = vector.load %arg5[%c1_30, %c0_31, %c0_32] : memref<2x32x1xf32, #tpu.memory_space<vmem>>, vector<1x32x1xf32>
    %52 = vector.shape_cast %51 : vector<1x32x1xf32> to vector<32x1xf32>
    %53 = vector.broadcast %52 : vector<32x1xf32> to vector<32x256xf32>
    %54 = arith.addf %50, %53 : vector<32x256xf32>
    %cst_33 = arith.constant 0.000000e+00 : f32
    %55 = vector.broadcast %cst_33 : f32 to vector<32x256xf32>
    %56 = arith.maximumf %54, %55 : vector<32x256xf32>
    %cst_34 = arith.constant dense<0.000000e+00> : vector<4x256xf32>
    %57 = tpu.matmul %2, %56, %cst_34 {dimension_numbers = #tpu.dot_dimension_numbers<[1], [0], [0], [1], [0, 0, 1, 1], [], []>} : vector<4x32xf32>, vector<32x256xf32>, vector<4x256xf32> -> vector<4x256xf32>
    %58 = vector.broadcast %3 : vector<4x1xf32> to vector<4x256xf32>
    %59 = arith.addf %57, %58 : vector<4x256xf32>
    %60 = arith.subf %38, %59 : vector<4x256xf32>
    %61 = arith.mulf %60, %60 : vector<4x256xf32>
    %cst_35 = arith.constant dense<0.000000e+00> : vector<256xf32>
    %62 = vector.multi_reduction <add>, %61, %cst_35 [0] : vector<4x256xf32> to vector<256xf32>
    %63 = vector.shape_cast %62 : vector<256xf32> to vector<1x256xf32>
    %64 = arith.addf %34, %63 : vector<1x256xf32>
    %c0_36 = arith.constant 0 : index
    %c0_37 = arith.constant 0 : index
    %c0_38 = arith.constant 0 : index
    %c0_39 = arith.constant 0 : index
    %65 = vector.load %arg9[%c0_36, %c0_37, %c0_38, %c0_39] : memref<1x1x1x256xf32, #tpu.memory_space<vmem>>, vector<1x1x1x256xf32>
    %66 = vector.shape_cast %65 : vector<1x1x1x256xf32> to vector<1x256xf32>
    %67 = vector.shape_cast %64 : vector<1x256xf32> to vector<1x1x1x256xf32>
    tpu.vector_store %arg9[%c0_36, %c0_37, %c0_38, %c0_39], %67 {strides = array<i32>} : memref<1x1x1x256xf32, #tpu.memory_space<vmem>>, vector<1x1x1x256xf32>,
    return
  }
  func.func @transform_0(%arg0: i32, %arg1: i32) -> (i32, i32) {
    %c0_i32 = arith.constant 0 : i32
    %c0_i32_0 = arith.constant 0 : i32
    %c0_i32_1 = arith.constant 0 : i32
    return %c0_i32, %c0_i32_0 : i32, i32
  }
  func.func @transform_1(%arg0: i32, %arg1: i32) -> (i32, i32, i32) {
    %c0_i32 = arith.constant 0 : i32
    %c0_i32_0 = arith.constant 0 : i32
    return %arg0, %c0_i32, %arg1 : i32, i32, i32
  }
  func.func @transform_2(%arg0: i32, %arg1: i32) -> (i32, i32, i32) {
    %c0_i32 = arith.constant 0 : i32
    %c0_i32_0 = arith.constant 0 : i32
    return %arg0, %c0_i32, %arg1 : i32, i32, i32
  }
  func.func @transform_3(%arg0: i32, %arg1: i32) -> (i32, i32, i32) {
    %c0_i32 = arith.constant 0 : i32
    %c0_i32_0 = arith.constant 0 : i32
    %c0_i32_1 = arith.constant 0 : i32
    return %arg0, %c0_i32, %c0_i32_0 : i32, i32, i32
  }
  func.func @transform_4(%arg0: i32, %arg1: i32) -> (i32, i32) {
    %c0_i32 = arith.constant 0 : i32
    %c0_i32_0 = arith.constant 0 : i32
    %c0_i32_1 = arith.constant 0 : i32
    return %c0_i32, %c0_i32_0 : i32, i32
  }
  func.func @transform_5(%arg0: i32, %arg1: i32) -> (i32, i32) {
    %c0_i32 = arith.constant 0 : i32
    %c0_i32_0 = arith.constant 0 : i32
    %c0_i32_1 = arith.constant 0 : i32
    return %c0_i32, %c0_i32_0 : i32, i32
  }
  func.func @transform_6(%arg0: i32, %arg1: i32) -> (i32, i32) {
    %c0_i32 = arith.constant 0 : i32
    %c0_i32_0 = arith.constant 0 : i32
    %c0_i32_1 = arith.constant 0 : i32
    return %c0_i32, %c0_i32_0 : i32, i32
  }
  func.func @transform_7(%arg0: i32, %arg1: i32) -> (i32, i32, i32, i32) {
    %c0_i32 = arith.constant 0 : i32
    %c0_i32_0 = arith.constant 0 : i32
    %c0_i32_1 = arith.constant 0 : i32
    return %arg0, %arg1, %c0_i32, %c0_i32_0 : i32, i32, i32, i32
  }
}

</mosaic_0001>

<llo_original>
// kernel: tpu_custom_call.1
$region0: #{tpu_custom_call.1}
  #allocation0 [shape = 'u32[]', space=smem, size = 0x4, offset = 0x4, fixed_abs, tag = 'smem constant byte address 0x4 - core index']
  #allocation1 [shape = 'u32[144,128]{1,0:T(1,128)}', space=vmem, size = 0x12000, scoped, tag = 'internal scratch']
  %s0 = inlined_call_operand.vmem [shape: f32[2,2], index: 0, kind: input, shape index: {}]
  %s1 = inlined_call_operand.vmem [shape: f32[2,4,256], index: 1, kind: input, shape index: {}]
  %s2 = inlined_call_operand.vmem [shape: f32[2,4,256], index: 2, kind: input, shape index: {}]
  %s3 = inlined_call_operand.vmem [shape: f32[2,32,1], index: 3, kind: input, shape index: {}]
  %s4 = inlined_call_operand.vmem [shape: f32[32,4], index: 4, kind: input, shape index: {}]
  %s5 = inlined_call_operand.vmem [shape: f32[4,32], index: 5, kind: input, shape index: {}]
  %s6 = inlined_call_operand.vmem [shape: f32[4,1], index: 6, kind: input, shape index: {}]
  %s7 = inlined_call_operand.hbm [shape: f32[1,1,1,256], index: 7, kind: output, shape index: {}]
  %s8 = sld [smem:[#allocation0]]
  $region42: #{tpu_custom_call.1} parent=0
    _
  %s10 = ssub.s32 1, %s8
  %s11 = scalar_select 0, %s10, %s8
  $region1: #{tpu_custom_call.1} parent=0
    #allocation2 [shape = 'u8[1024]{0}', space=smem, size = 0x400, scoped, tag = 'input window, operand 0, single buffered']
    #allocation3 [shape = 's32[1]{0}', space=sflag, size = 0x4, scoped, tag = 'scoped memory for tpu_custom_call.1']
    #allocation4 [shape = 's32[1]{0}', space=sflag, size = 0x4, scoped, tag = 'scoped memory for tpu_custom_call.1']
    #allocation5 [shape = 'u8[1024]{0}', space=vmem, size = 0x400, scoped, tag = 'output window, operand 0, single buffered']
    %12 = vsyncpa [#allocation4], 0
    %13 = vsyncpa [#allocation3], 0
    // Predicated region
    $region2: #{tpu_custom_call.1} parent=1 // pred_check
      _
    $region3: #{tpu_custom_call.1} parent=1 // pred_check_branch
      %15 = sbr.rel (0) target = $region5
    $region4: #{tpu_custom_call.1} parent=1 // pred_region
      %s17 = ssub.s32 32, 32
      %18 = vsyncadd [#allocation4], %s17
      %s20 = sshll.u32 %s0, 4
      %s21 = int_to_ptr.vmem [resolvable:$true] %s20
      %23 = dma.vmem_to_smem %s21, 32, [#allocation2], [#allocation4]
    $region5: #{tpu_custom_call.1} parent=1 // pred_fallthru
      _
    // Predicated region
    $region6: #{tpu_custom_call.1} parent=1 // pred_check
      _
    $region7: #{tpu_custom_call.1} parent=1 // pred_check_branch
      %25 = sbr.rel (0) target = $region9
    $region8: #{tpu_custom_call.1} parent=1 // pred_region
      _
    $region9: #{tpu_custom_call.1} parent=1 // pred_fallthru
      _
    // Predicated region
    $region10: #{tpu_custom_call.1} parent=1 // pred_check
      _
    $region11: #{tpu_custom_call.1} parent=1 // pred_check_branch
      %27 = sbr.rel (0) target = $region13
    $region12: #{tpu_custom_call.1} parent=1 // pred_region
      _
    $region13: #{tpu_custom_call.1} parent=1 // pred_fallthru
      _
    // Predicated region
    $region14: #{tpu_custom_call.1} parent=1 // pred_check
      _
    $region15: #{tpu_custom_call.1} parent=1 // pred_check_branch
      %29 = sbr.rel (0) target = $region17
    $region16: #{tpu_custom_call.1} parent=1 // pred_region
      _
    $region17: #{tpu_custom_call.1} parent=1 // pred_fallthru
      _
    // Predicated region
    $region18: #{tpu_custom_call.1} parent=1 // pred_check
      _
    $region19: #{tpu_custom_call.1} parent=1 // pred_check_branch
      %31 = sbr.rel (0) target = $region21
    $region20: #{tpu_custom_call.1} parent=1 // pred_region
      _
    $region21: #{tpu_custom_call.1} parent=1 // pred_fallthru
      _
    // Predicated region
    $region22: #{tpu_custom_call.1} parent=1 // pred_check
      _
    $region23: #{tpu_custom_call.1} parent=1 // pred_check_branch
      %33 = sbr.rel (0) target = $region25
    $region24: #{tpu_custom_call.1} parent=1 // pred_region
      _
    $region25: #{tpu_custom_call.1} parent=1 // pred_fallthru
      _
    // Predicated region
    $region26: #{tpu_custom_call.1} parent=1 // pred_check
      _
    $region27: #{tpu_custom_call.1} parent=1 // pred_check_branch
      %35 = sbr.rel (0) target = $region29
    $region28: #{tpu_custom_call.1} parent=1 // pred_region
      _
    $region29: #{tpu_custom_call.1} parent=1 // pred_fallthru
      _
    // Predicated region
    $region30: #{tpu_custom_call.1} parent=1 // pred_check
      _
    $region31: #{tpu_custom_call.1} parent=1 // pred_check_branch
      %37 = sbr.rel (0) target = $region33
    $region32: #{tpu_custom_call.1} parent=1 // pred_region
      %38 = dma.done [#allocation4], 32
    $region33: #{tpu_custom_call.1} parent=1 // pred_fallthru
      _
    %39 = sfence
    %s40 = smul.u32 0, 2
    %v41 = vld [vmem:[%s4] sm:$0xff]
    %v42 = vld [vmem:[%s4 + $0x8] sm:$0xff]
    %v43 = vld [vmem:[%s4 + $0x10] sm:$0xff]
    %v44 = vld [vmem:[%s4 + $0x18] sm:$0xff]
    %v45 = vld [vmem:[%s5] sm:$0xf]
    %v46 = vld [vmem:[%s6] sm:$0xf]
    %v47 = vld [vmem:[%s1] sm:$0xff]
    %v48 = vld [vmem:[%s2] sm:$0xff]
    %s49 = sld [smem:[#allocation2 + %s40]]
    %s50 = sshra.s32 %s40, 7
    %s51 = sand.u32 %s40, 127
    %s52 = sadd.s32 %s50, 1
    %s53 = smul.u32 %s52, 128
    %s54 = sshra.s32 %s40, 7
    %s55 = sand.u32 %s40, 127
    %s56 = sadd.s32 %s53, %s55
    %s57 = sld [smem:[#allocation2 + %s56]]
    %v58 = vstv %s49
    %v59 = vmul.f32 %v58, %v47
    %v60 = vstv %s57
    %v61 = vmul.f32 %v60, %v48
    %v62 = vadd.f32 %v59, %v61
    %v63 = vld [vmem:[%s3] sm:$0xff]
    %v64 = vld [vmem:[%s3 + $0x8] sm:$0xff]
    %v65 = vld [vmem:[%s3 + $0x10] sm:$0xff]
    %v66 = vld [vmem:[%s3 + $0x18] sm:$0xff]
    %68 = vset.pattern.permute.xlu0 0
    %69 = vperm.xlu0 %68, %v63
    %v70 = vpop.permute.xlu0 %69
    %73 = vset.pattern.permute.xlu0 0
    %74 = vperm.xlu0 %73, %v64
    %v75 = vpop.permute.xlu0 %74
    %78 = vset.pattern.permute.xlu0 0
    %79 = vperm.xlu0 %78, %v65
    %v80 = vpop.permute.xlu0 %79
    %83 = vset.pattern.permute.xlu0 0
    %84 = vperm.xlu0 %83, %v66
    %v85 = vpop.permute.xlu0 %84
    %v88 = vcombine.high %v62, %v62
    %vm89 = vcmask 31744
    %v91 = vsel %vm89, %v41, 0
    %v94 = vsel %vm89, %v42, 0
    %v97 = vsel %vm89, %v43, 0
    %v100 = vsel %vm89, %v44, 0
    %vm102 = vcmask 1043456
    %v103 = vsel %vm102, %v62, 0
    %v105 = vsel %vm102, %v88, 0
    %107 = vmatprep.subr.mxu0 %v105
    %108 = vmatpush1.msra.mxu0 %v103
    %109 = vmatprep.subr.mxu0 0.0
    %110 = vmatpush1.msra.mxu0 0.0
    %111 = vmatprep.subr.mxu0 0.0
    %112 = vmatpush1.msra.mxu0 0.0
    %113 = vmatprep.subr.mxu0 0.0
    %114 = vmatpush1.msra.mxu0 0.0
    %115 = vmatprep.subr.mxu0 0.0
    %116 = vmatpush1.msra.mxu0 0.0
    %117 = vmatprep.subr.mxu0 0.0
    %118 = vmatpush1.msra.mxu0 0.0
    %119 = vmatprep.subr.mxu0 0.0
    %120 = vmatpush1.msra.mxu0 0.0
    %121 = vmatprep.subr.mxu0 0.0
    %122 = vmatpush1.msra.mxu0 0.0
    %123 = vmatprep.subr.mxu0 0.0
    %124 = vmatpush1.msra.mxu0 0.0
    %125 = vmatprep.subr.mxu0 0.0
    %126 = vmatpush1.msra.mxu0 0.0
    %127 = vmatprep.subr.mxu0 0.0
    %128 = vmatpush1.msra.mxu0 0.0
    %129 = vmatprep.subr.mxu0 0.0
    %130 = vmatpush1.msra.mxu0 0.0
    %131 = vmatprep.subr.mxu0 0.0
    %132 = vmatpush1.msra.mxu0 0.0
    %133 = vmatprep.subr.mxu0 0.0
    %134 = vmatpush1.msra.mxu0 0.0
    %135 = vmatprep.subr.mxu0 0.0
    %136 = vmatpush1.msra.mxu0 0.0
    %137 = vmatprep.subr.mxu0 0.0
    %138 = vmatpush1.msra.mxu0 0.0
    %139 = vmatprep.subr.mxu0 0.0
    %140 = vmatpush1.msra.mxu0 0.0
    %141 = vmatprep.subr.mxu0 0.0
    %142 = vmatpush1.msra.mxu0 0.0
    %143 = vmatprep.subr.mxu0 0.0
    %144 = vmatpush1.msra.mxu0 0.0
    %145 = vmatprep.subr.mxu0 0.0
    %146 = vmatpush1.msra.mxu0 0.0
    %147 = vmatprep.subr.mxu0 0.0
    %148 = vmatpush1.msra.mxu0 0.0
    %149 = vmatprep.subr.mxu0 0.0
    %150 = vmatpush1.msra.mxu0 0.0
    %151 = vmatprep.subr.mxu0 0.0
    %152 = vmatpush1.msra.mxu0 0.0
    %153 = vmatprep.subr.mxu0 0.0
    %154 = vmatpush1.msra.mxu0 0.0
    %155 = vmatprep.subr.mxu0 0.0
    %156 = vmatpush1.msra.mxu0 0.0
    %157 = vmatprep.subr.mxu0 0.0
    %158 = vmatpush1.msra.mxu0 0.0
    %159 = vmatprep.subr.mxu0 0.0
    %160 = vmatpush1.msra.mxu0 0.0
    %161 = vmatprep.subr.mxu0 0.0
    %162 = vmatpush1.msra.mxu0 0.0
    %163 = vmatprep.subr.mxu0 0.0
    %164 = vmatpush1.msra.mxu0 0.0
    %165 = vmatprep.subr.mxu0 0.0
    %166 = vmatpush1.msra.mxu0 0.0
    %167 = vmatprep.subr.mxu0 0.0
    %168 = vmatpush1.msra.mxu0 0.0
    %169 = vmatprep.subr.mxu0 0.0
    %170 = vmatpush1.msra.mxu0 0.0
    %171 = vmatprep.mubr.f32.mxu0 0.0
    %172 = vmatmul.mubr.f32.gmra.mrb[0].mxu0 %v91
    %v173 = vpop.f32.mrb[0].mxu0
    %v174 = vadd.f32 %v70, %v173
    %v175 = vpop.f32.mrb[0].mxu0
    %v176 = vadd.f32 %v70, %v175
    %177 = vmatprep.mubr.f32.mxu0 0.0
    %178 = vmatmul.mubr.f32.gmra.mrb[0].mxu0 %v94
    %v179 = vpop.f32.mrb[0].mxu0
    %v180 = vadd.f32 %v75, %v179
    %v181 = vpop.f32.mrb[0].mxu0
    %v182 = vadd.f32 %v75, %v181
    %183 = vmatprep.mubr.f32.mxu0 0.0
    %184 = vmatmul.mubr.f32.gmra.mrb[0].mxu0 %v97
    %v185 = vpop.f32.mrb[0].mxu0
    %v186 = vadd.f32 %v80, %v185
    %v187 = vpop.f32.mrb[0].mxu0
    %v188 = vadd.f32 %v80, %v187
    %189 = vmatprep.mubr.f32.mxu0 0.0
    %190 = vmatmul.mubr.f32.gmra.mrb[0].mxu0 %v100
    %v191 = vpop.f32.mrb[0].mxu0
    %v192 = vadd.f32 %v85, %v191
    %v193 = vpop.f32.mrb[0].mxu0
    %v194 = vadd.f32 %v85, %v193
    %195 = vdwg.mxu0
    %v196 = vmax.f32 %v174, 0.0
    %v197 = vmax.f32 %v176, 0.0
    %v198 = vmax.f32 %v180, 0.0
    %v199 = vmax.f32 %v182, 0.0
    %v200 = vmax.f32 %v186, 0.0
    %v201 = vmax.f32 %v188, 0.0
    %v202 = vmax.f32 %v192, 0.0
    %v203 = vmax.f32 %v194, 0.0
    %205 = vset.pattern.permute.xlu0 0
    %206 = vperm.xlu0 %205, %v46
    %v207 = vpop.permute.xlu0 %206
    %vm209 = vcmask 261120
    %v211 = vsel %vm209, %v45, 0
    %213 = vmatprep.subr.mxu0 %v197
    %214 = vmatpush1.msra.mxu0 %v196
    %215 = vmatprep.subr.mxu0 %v199
    %216 = vmatpush1.msra.mxu0 %v198
    %217 = vmatprep.subr.mxu0 %v201
    %218 = vmatpush1.msra.mxu0 %v200
    %219 = vmatprep.subr.mxu0 %v203
    %220 = vmatpush1.msra.mxu0 %v202
    %221 = vmatprep.subr.mxu0 0.0
    %222 = vmatpush1.msra.mxu0 0.0
    %223 = vmatprep.subr.mxu0 0.0
    %224 = vmatpush1.msra.mxu0 0.0
    %225 = vmatprep.subr.mxu0 0.0
    %226 = vmatpush1.msra.mxu0 0.0
    %227 = vmatprep.subr.mxu0 0.0
    %228 = vmatpush1.msra.mxu0 0.0
    %229 = vmatprep.subr.mxu0 0.0
    %230 = vmatpush1.msra.mxu0 0.0
    %231 = vmatprep.subr.mxu0 0.0
    %232 = vmatpush1.msra.mxu0 0.0
    %233 = vmatprep.subr.mxu0 0.0
    %234 = vmatpush1.msra.mxu0 0.0
    %235 = vmatprep.subr.mxu0 0.0
    %236 = vmatpush1.msra.mxu0 0.0
    %237 = vmatprep.subr.mxu0 0.0
    %238 = vmatpush1.msra.mxu0 0.0
    %239 = vmatprep.subr.mxu0 0.0
    %240 = vmatpush1.msra.mxu0 0.0
    %241 = vmatprep.subr.mxu0 0.0
    %242 = vmatpush1.msra.mxu0 0.0
    %243 = vmatprep.subr.mxu0 0.0
    %244 = vmatpush1.msra.mxu0 0.0
    %245 = vmatprep.subr.mxu0 0.0
    %246 = vmatpush1.msra.mxu0 0.0
    %247 = vmatprep.subr.mxu0 0.0
    %248 = vmatpush1.msra.mxu0 0.0
    %249 = vmatprep.subr.mxu0 0.0
    %250 = vmatpush1.msra.mxu0 0.0
    %251 = vmatprep.subr.mxu0 0.0
    %252 = vmatpush1.msra.mxu0 0.0
    %253 = vmatprep.subr.mxu0 0.0
    %254 = vmatpush1.msra.mxu0 0.0
    %255 = vmatprep.subr.mxu0 0.0
    %256 = vmatpush1.msra.mxu0 0.0
    %257 = vmatprep.subr.mxu0 0.0
    %258 = vmatpush1.msra.mxu0 0.0
    %259 = vmatprep.subr.mxu0 0.0
    %260 = vmatpush1.msra.mxu0 0.0
    %261 = vmatprep.subr.mxu0 0.0
    %262 = vmatpush1.msra.mxu0 0.0
    %263 = vmatprep.subr.mxu0 0.0
    %264 = vmatpush1.msra.mxu0 0.0
    %265 = vmatprep.subr.mxu0 0.0
    %266 = vmatpush1.msra.mxu0 0.0
    %267 = vmatprep.subr.mxu0 0.0
    %268 = vmatpush1.msra.mxu0 0.0
    %269 = vmatprep.subr.mxu0 0.0
    %270 = vmatpush1.msra.mxu0 0.0
    %271 = vmatprep.subr.mxu0 0.0
    %272 = vmatpush1.msra.mxu0 0.0
    %273 = vmatprep.subr.mxu0 0.0
    %274 = vmatpush1.msra.mxu0 0.0
    %275 = vmatprep.subr.mxu0 0.0
    %276 = vmatpush1.msra.mxu0 0.0
    %277 = vmatprep.mubr.f32.mxu0 0.0
    %278 = vmatmul.mubr.f32.gmra.mrb[0].mxu0 %v211
    %v279 = vpop.f32.mrb[0].mxu0
    %v280 = vadd.f32 %v207, %v279
    %v281 = vpop.f32.mrb[0].mxu0
    %v282 = vadd.f32 %v207, %v281
    %283 = vdwg.mxu0
    %v286 = vcombine.low %v280, %v282
    %v288 = vsub.f32 %v48, %v286
    %v289 = vmul.f32 %v288, %v288
    %v291 = vcombine.high %v289, %v289
    %v293 = vsel %vm102, %v289, 0.0
    %v294 = vrot.slane %v293, 4
    %v295 = vadd.f32 %v293, %v294
    %v296 = vrot.slane %v295, 2
    %v297 = vadd.f32 %v295, %v296
    %v298 = vrot.slane %v297, 1
    %v299 = vadd.f32 %v297, %v298
    %v300 = vsel %vm102, %v291, 0.0
    %v301 = vrot.slane %v300, 4
    %v302 = vadd.f32 %v300, %v301
    %v303 = vrot.slane %v302, 2
    %v304 = vadd.f32 %v302, %v303
    %v305 = vrot.slane %v304, 1
    %v306 = vadd.f32 %v304, %v305
    %v307 = vadd.f32 %v299, 0.0
    %v308 = vadd.f32 %v306, 0.0
    %s309 = scalar_lea.vmem %s1, 8
    %v310 = vld [vmem:[%s309] sm:$0xff]
    %s311 = scalar_lea.vmem %s2, 8
    %v312 = vld [vmem:[%s311] sm:$0xff]
    %s313 = sadd.s32 %s40, 1
    %s314 = sld [smem:[#allocation2 + %s313]]
    %s315 = sshra.s32 %s313, 7
    %s316 = sand.u32 %s313, 127
    %s317 = sadd.s32 %s315, 1
    %s318 = smul.u32 %s317, 128
    %s319 = sshra.s32 %s313, 7
    %s320 = sand.u32 %s313, 127
    %s321 = sadd.s32 %s318, %s320
    %s322 = sld [smem:[#allocation2 + %s321]]
    %v323 = vstv %s314
    %v324 = vmul.f32 %v323, %v310
    %v325 = vstv %s322
    %v326 = vmul.f32 %v325, %v312
    %v327 = vadd.f32 %v324, %v326
    %s328 = scalar_lea.vmem %s3, 32
    %v329 = vld [vmem:[%s328] sm:$0xff]
    %v330 = vld [vmem:[%s328 + $0x8] sm:$0xff]
    %v331 = vld [vmem:[%s328 + $0x10] sm:$0xff]
    %v332 = vld [vmem:[%s328 + $0x18] sm:$0xff]
    %334 = vset.pattern.permute.xlu0 0
    %335 = vperm.xlu0 %334, %v329
    %v336 = vpop.permute.xlu0 %335
    %339 = vset.pattern.permute.xlu0 0
    %340 = vperm.xlu0 %339, %v330
    %v341 = vpop.permute.xlu0 %340
    %344 = vset.pattern.permute.xlu0 0
    %345 = vperm.xlu0 %344, %v331
    %v346 = vpop.permute.xlu0 %345
    %349 = vset.pattern.permute.xlu0 0
    %350 = vperm.xlu0 %349, %v332
    %v351 = vpop.permute.xlu0 %350
    %v354 = vcombine.high %v327, %v327
    %v355 = vsel %vm102, %v327, 0
    %v357 = vsel %vm102, %v354, 0
    %359 = vmatprep.subr.mxu0 %v357
    %360 = vmatpush1.msra.mxu0 %v355
    %361 = vmatprep.subr.mxu0 0.0
    %362 = vmatpush1.msra.mxu0 0.0
    %363 = vmatprep.subr.mxu0 0.0
    %364 = vmatpush1.msra.mxu0 0.0
    %365 = vmatprep.subr.mxu0 0.0
    %366 = vmatpush1.msra.mxu0 0.0
    %367 = vmatprep.subr.mxu0 0.0
    %368 = vmatpush1.msra.mxu0 0.0
    %369 = vmatprep.subr.mxu0 0.0
    %370 = vmatpush1.msra.mxu0 0.0
    %371 = vmatprep.subr.mxu0 0.0
    %372 = vmatpush1.msra.mxu0 0.0
    %373 = vmatprep.subr.mxu0 0.0
    %374 = vmatpush1.msra.mxu0 0.0
    %375 = vmatprep.subr.mxu0 0.0
    %376 = vmatpush1.msra.mxu0 0.0
    %377 = vmatprep.subr.mxu0 0.0
    %378 = vmatpush1.msra.mxu0 0.0
    %379 = vmatprep.subr.mxu0 0.0
    %380 = vmatpush1.msra.mxu0 0.0
    %381 = vmatprep.subr.mxu0 0.0
    %382 = vmatpush1.msra.mxu0 0.0
    %383 = vmatprep.subr.mxu0 0.0
    %384 = vmatpush1.msra.mxu0 0.0
    %385 = vmatprep.subr.mxu0 0.0
    %386 = vmatpush1.msra.mxu0 0.0
    %387 = vmatprep.subr.mxu0 0.0
    %388 = vmatpush1.msra.mxu0 0.0
    %389 = vmatprep.subr.mxu0 0.0
    %390 = vmatpush1.msra.mxu0 0.0
    %391 = vmatprep.subr.mxu0 0.0
    %392 = vmatpush1.msra.mxu0 0.0
    %393 = vmatprep.subr.mxu0 0.0
    %394 = vmatpush1.msra.mxu0 0.0
    %395 = vmatprep.subr.mxu0 0.0
    %396 = vmatpush1.msra.mxu0 0.0
    %397 = vmatprep.subr.mxu0 0.0
    %398 = vmatpush1.msra.mxu0 0.0
    %399 = vmatprep.subr.mxu0 0.0
    %400 = vmatpush1.msra.mxu0 0.0
    %401 = vmatprep.subr.mxu0 0.0
    %402 = vmatpush1.msra.mxu0 0.0
    %403 = vmatprep.subr.mxu0 0.0
    %404 = vmatpush1.msra.mxu0 0.0
    %405 = vmatprep.subr.mxu0 0.0
    %406 = vmatpush1.msra.mxu0 0.0
    %407 = vmatprep.subr.mxu0 0.0
    %408 = vmatpush1.msra.mxu0 0.0
    %409 = vmatprep.subr.mxu0 0.0
    %410 = vmatpush1.msra.mxu0 0.0
    %411 = vmatprep.subr.mxu0 0.0
    %412 = vmatpush1.msra.mxu0 0.0
    %413 = vmatprep.subr.mxu0 0.0
    %414 = vmatpush1.msra.mxu0 0.0
    %415 = vmatprep.subr.mxu0 0.0
    %416 = vmatpush1.msra.mxu0 0.0
    %417 = vmatprep.subr.mxu0 0.0
    %418 = vmatpush1.msra.mxu0 0.0
    %419 = vmatprep.subr.mxu0 0.0
    %420 = vmatpush1.msra.mxu0 0.0
    %421 = vmatprep.subr.mxu0 0.0
    %422 = vmatpush1.msra.mxu0 0.0
    %423 = vmatprep.mubr.f32.mxu0 0.0
    %424 = vmatmul.mubr.f32.gmra.mrb[0].mxu0 %v91
    %v425 = vpop.f32.mrb[0].mxu0
    %v426 = vadd.f32 %v336, %v425
    %v427 = vpop.f32.mrb[0].mxu0
    %v428 = vadd.f32 %v336, %v427
    %429 = vmatprep.mubr.f32.mxu0 0.0
    %430 = vmatmul.mubr.f32.gmra.mrb[0].mxu0 %v94
    %v431 = vpop.f32.mrb[0].mxu0
    %v432 = vadd.f32 %v341, %v431
    %v433 = vpop.f32.mrb[0].mxu0
    %v434 = vadd.f32 %v341, %v433
    %435 = vmatprep.mubr.f32.mxu0 0.0
    %436 = vmatmul.mubr.f32.gmra.mrb[0].mxu0 %v97
    %v437 = vpop.f32.mrb[0].mxu0
    %v438 = vadd.f32 %v346, %v437
    %v439 = vpop.f32.mrb[0].mxu0
    %v440 = vadd.f32 %v346, %v439
    %441 = vmatprep.mubr.f32.mxu0 0.0
    %442 = vmatmul.mubr.f32.gmra.mrb[0].mxu0 %v100
    %v443 = vpop.f32.mrb[0].mxu0
    %v444 = vadd.f32 %v351, %v443
    %v445 = vpop.f32.mrb[0].mxu0
    %v446 = vadd.f32 %v351, %v445
    %447 = vdwg.mxu0
    %v448 = vmax.f32 %v426, 0.0
    %v449 = vmax.f32 %v428, 0.0
    %v450 = vmax.f32 %v432, 0.0
    %v451 = vmax.f32 %v434, 0.0
    %v452 = vmax.f32 %v438, 0.0
    %v453 = vmax.f32 %v440, 0.0
    %v454 = vmax.f32 %v444, 0.0
    %v455 = vmax.f32 %v446, 0.0
    %456 = vmatprep.subr.mxu0 %v449
    %457 = vmatpush1.msra.mxu0 %v448
    %458 = vmatprep.subr.mxu0 %v451
    %459 = vmatpush1.msra.mxu0 %v450
    %460 = vmatprep.subr.mxu0 %v453
    %461 = vmatpush1.msra.mxu0 %v452
    %462 = vmatprep.subr.mxu0 %v455
    %463 = vmatpush1.msra.mxu0 %v454
    %464 = vmatprep.subr.mxu0 0.0
    %465 = vmatpush1.msra.mxu0 0.0
    %466 = vmatprep.subr.mxu0 0.0
    %467 = vmatpush1.msra.mxu0 0.0
    %468 = vmatprep.subr.mxu0 0.0
    %469 = vmatpush1.msra.mxu0 0.0
    %470 = vmatprep.subr.mxu0 0.0
    %471 = vmatpush1.msra.mxu0 0.0
    %472 = vmatprep.subr.mxu0 0.0
    %473 = vmatpush1.msra.mxu0 0.0
    %474 = vmatprep.subr.mxu0 0.0
    %475 = vmatpush1.msra.mxu0 0.0
    %476 = vmatprep.subr.mxu0 0.0
    %477 = vmatpush1.msra.mxu0 0.0
    %478 = vmatprep.subr.mxu0 0.0
    %479 = vmatpush1.msra.mxu0 0.0
    %480 = vmatprep.subr.mxu0 0.0
    %481 = vmatpush1.msra.mxu0 0.0
    %482 = vmatprep.subr.mxu0 0.0
    %483 = vmatpush1.msra.mxu0 0.0
    %484 = vmatprep.subr.mxu0 0.0
    %485 = vmatpush1.msra.mxu0 0.0
    %486 = vmatprep.subr.mxu0 0.0
    %487 = vmatpush1.msra.mxu0 0.0
    %488 = vmatprep.subr.mxu0 0.0
    %489 = vmatpush1.msra.mxu0 0.0
    %490 = vmatprep.subr.mxu0 0.0
    %491 = vmatpush1.msra.mxu0 0.0
    %492 = vmatprep.subr.mxu0 0.0
    %493 = vmatpush1.msra.mxu0 0.0
    %494 = vmatprep.subr.mxu0 0.0
    %495 = vmatpush1.msra.mxu0 0.0
    %496 = vmatprep.subr.mxu0 0.0
    %497 = vmatpush1.msra.mxu0 0.0
    %498 = vmatprep.subr.mxu0 0.0
    %499 = vmatpush1.msra.mxu0 0.0
    %500 = vmatprep.subr.mxu0 0.0
    %501 = vmatpush1.msra.mxu0 0.0
    %502 = vmatprep.subr.mxu0 0.0
    %503 = vmatpush1.msra.mxu0 0.0
    %504 = vmatprep.subr.mxu0 0.0
    %505 = vmatpush1.msra.mxu0 0.0
    %506 = vmatprep.subr.mxu0 0.0
    %507 = vmatpush1.msra.mxu0 0.0
    %508 = vmatprep.subr.mxu0 0.0
    %509 = vmatpush1.msra.mxu0 0.0
    %510 = vmatprep.subr.mxu0 0.0
    %511 = vmatpush1.msra.mxu0 0.0
    %512 = vmatprep.subr.mxu0 0.0
    %513 = vmatpush1.msra.mxu0 0.0
    %514 = vmatprep.subr.mxu0 0.0
    %515 = vmatpush1.msra.mxu0 0.0
    %516 = vmatprep.subr.mxu0 0.0
    %517 = vmatpush1.msra.mxu0 0.0
    %518 = vmatprep.subr.mxu0 0.0
    %519 = vmatpush1.msra.mxu0 0.0
    %520 = vmatprep.mubr.f32.mxu0 0.0
    %521 = vmatmul.mubr.f32.gmra.mrb[0].mxu0 %v211
    %v522 = vpop.f32.mrb[0].mxu0
    %v523 = vadd.f32 %v207, %v522
    %v524 = vpop.f32.mrb[0].mxu0
    %v525 = vadd.f32 %v207, %v524
    %526 = vdwg.mxu0
    %v529 = vcombine.low %v523, %v525
    %v531 = vsub.f32 %v312, %v529
    %v532 = vmul.f32 %v531, %v531
    %v534 = vcombine.high %v532, %v532
    %v536 = vsel %vm102, %v532, 0.0
    %v537 = vrot.slane %v536, 4
    %v538 = vadd.f32 %v536, %v537
    %v539 = vrot.slane %v538, 2
    %v540 = vadd.f32 %v538, %v539
    %v541 = vrot.slane %v540, 1
    %v542 = vadd.f32 %v540, %v541
    %v543 = vsel %vm102, %v534, 0.0
    %v544 = vrot.slane %v543, 4
    %v545 = vadd.f32 %v543, %v544
    %v546 = vrot.slane %v545, 2
    %v547 = vadd.f32 %v545, %v546
    %v548 = vrot.slane %v547, 1
    %v549 = vadd.f32 %v547, %v548
    %v550 = vadd.f32 %v307, %v542
    %v551 = vadd.f32 %v308, %v549
    %v554 = vcombine.low %v550, %v551
    %v556 = vunpack.c.l.s4 1966171168
    %v557 = vunpack.c.0.s8 %v556
    %v558 = vlaneseq
    %v559 = vshrl.u32 %v558, 7
    %v560 = vsub.s32 %v557, %v559
    %v561 = vrot.slane %v554, %v560
    %v563 = vunpack.c.l.s4 1966171168
    %v564 = vunpack.c.0.s8 %v563
    %v565 = vlaneseq
    %v566 = vshrl.u32 %v565, 7
    %v567 = vsub.s32 %v564, %v566
    %v568 = vrot.slane %v561, %v567
    %v570 = vlaneseq
    %vm571 = vcmp.ge.s32.totalorder %v570, 0
    %vm572 = vcmp.lt.s32.totalorder %v570, 256
    %vm573 = vmand %vm571, %vm572
    %574 = vst.msk [vmem:[#allocation5] sm:$0x3] %vm573, %v568
    // Predicated region
    $region34: #{tpu_custom_call.1} parent=1 // pred_check
      _
    $region35: #{tpu_custom_call.1} parent=1 // pred_check_branch
      %576 = sbr.rel (0) target = $region37
    $region36: #{tpu_custom_call.1} parent=1 // pred_region
      %s578 = ssub.s32 32, 32
      %579 = vsyncadd [#allocation3], %s578
      %s581 = sshll.u32 [#allocation5], 4
      %s582 = int_to_ptr.vmem [resolvable:$true] %s581
      %584 = dma.vmem_to_hbm [thread:$0]  %s582, 32, %s7, [#allocation3]
    $region37: #{tpu_custom_call.1} parent=1 // pred_fallthru
      _
    // Predicated region
    $region38: #{tpu_custom_call.1} parent=1 // pred_check
      _
    $region39: #{tpu_custom_call.1} parent=1 // pred_check_branch
      %586 = sbr.rel (0) target = $region41
    $region40: #{tpu_custom_call.1} parent=1 // pred_region
      %587 = dma.done [#allocation3], 32
    $region41: #{tpu_custom_call.1} parent=1 // pred_fallthru
      _
    %588 = vsyncpa [#allocation3], 1
    %589 = vsyncpa [#allocation4], 1

</llo_original>
